<compile_context>
chip_gen: v7x
topology: tpu7x:2x2x1
jax: 0.10.0
libtpu: 0.0.40
codegen_flags: <defaults>
</compile_context>

<pallas_src>
import jax
import jax.numpy as jnp
from jax.experimental import pallas as pl
from jax.experimental.pallas import tpu as pltpu

_LANES = 128
_IN_F = 6


def fold_ndvi_kernel(b_ref, x_ref, w_ref, o_ref):
    # b_ref: SMEM f32[2]       = [b0-b1, b0+b1]
    # x_ref: VMEM (R, 768)     -- 128 samples per row, 6 features interleaved
    # w_ref: VMEM (768, 256)   -- folded weight / de-interleave matrix (resident)
    # o_ref: VMEM (R, 128)     -- NDVI, lane+sublane dense
    acc = jnp.dot(x_ref[...], w_ref[...], preferred_element_type=jnp.float32)
    num = acc[:, :_LANES] + b_ref[0]
    den = acc[:, _LANES:] + b_ref[1]
    # Exact f32 divide: keeps fidelity to the reference; VALU/EUP have slack.
    # (Ragged last blocks may compute inf/NaN in garbage rows; those rows are
    #  never written back, and TPUs do not trap on FP exceptions.)
    o_ref[...] = (num / den).astype(o_ref.dtype)


def _cdiv(a, b):
    return (a + b - 1) // b


def _round_up(a, b):
    return _cdiv(a, b) * b


def _ndvi_ref(x, weight, bias):
    # Plain-XLA path (small batches / ragged tail): one fused VPU op.
    y = x @ weight.T + bias
    return (y[:, 0:1] - y[:, 1:2]) / (y[:, 0:1] + y[:, 1:2])


def model_forward(x, weight, bias, *, tile_rows=1024):
    """x: (N, 6) f32, weight: (2, 6) (nn.Linear layout), bias: (2,) -> (N, 1)."""
    n, in_f = x.shape
    assert in_f == _IN_F and weight.shape == (2, _IN_F) and bias.shape == (2,)
    x = x.astype(jnp.float32)
    weight = weight.astype(jnp.float32)
    bias = bias.astype(jnp.float32)

    n_main = (n // _LANES) * _LANES
    m = n_main // _LANES                       # number of 128-sample row blocks
    if m == 0:
        # Tiny batch: pallas_call fixed overhead dominates -> plain XLA.
        return _ndvi_ref(x, weight, bias)

    # ---- fold fc1 into the NDVI ratio -------------------------------------
    wd = weight[0] - weight[1]                                  # (6,)
    ws = weight[0] + weight[1]                                  # (6,)
    b2 = jnp.stack([bias[0] - bias[1], bias[0] + bias[1]])      # SMEM scalars

    # (768, 256) fold/de-interleave matrix: W[l*6+f, l] = wd[f],
    # W[l*6+f, 128+l] = ws[f].  Tiny one-time build; lives in VMEM.
    eye = jnp.eye(_LANES, dtype=jnp.float32)                    # (128, 128)
    w_num = (eye[:, None, :] * wd[None, :, None]).reshape(_LANES * _IN_F, _LANES)
    w_den = (eye[:, None, :] * ws[None, :, None]).reshape(_LANES * _IN_F, _LANES)
    w_fold = jnp.concatenate([w_num, w_den], axis=1)            # (768, 256)

    # ---- zero-copy blocked view of x --------------------------------------
    # Row i of x_blk = samples [i*128, (i+1)*128), features interleaved.
    x_main = x if n_main == n else x[:n_main]
    x_blk = x_main.reshape(m, _LANES * _IN_F)                   # (M, 768)

    # ---- tile selection -----------------------------------------------------
    # Big tiles amortize the ~0.35 us/step overhead; keep >=2 grid steps when
    # there is enough work so v7x's two TensorCores both get a share.
    if m <= tile_rows:
        r = m                                   # full-dim block (always legal)
        if m >= 16:
            r = _round_up(_cdiv(m, 2), 8)       # >=2 parallel steps
    else:
        r = _round_up(tile_rows, 8)
    grid = (_cdiv(m, r),)

    bytes_accessed = 4 * (m * _LANES * _IN_F        # x
                          + m * _LANES              # out
                          + _LANES * _IN_F * 2 * _LANES  # W (resident)
                          + 2)                      # biases
    cost = pl.CostEstimate(
        flops=2 * m * (_LANES * _IN_F) * (2 * _LANES) + 3 * m * _LANES,
        transcendentals=0,
        bytes_accessed=bytes_accessed)

    out_blk = pl.pallas_call(
        fold_ndvi_kernel,
        out_shape=jax.ShapeDtypeStruct((m, _LANES), jnp.float32),
        grid=grid,
        in_specs=[
            pl.BlockSpec(memory_space=pltpu.MemorySpace.SMEM),              # folded biases
            pl.BlockSpec((r, _LANES * _IN_F), lambda i: (i, 0)),            # x tile
            pl.BlockSpec((_LANES * _IN_F, 2 * _LANES), lambda i: (0, 0)),   # W, resident
        ],
        out_specs=pl.BlockSpec((r, _LANES), lambda i: (i, 0)),
        compiler_params=pltpu.CompilerParams(
            dimension_semantics=("parallel",),
            vmem_limit_bytes=32 * 1024 * 1024),
        cost_estimate=cost,
    )(b2, x_blk, w_fold)

    out_main = out_blk.reshape(n_main, 1)       # free reshape back to (N_main, 1)
    if n_main == n:
        return out_main
    # Ragged tail (< 128 rows): plain XLA + one small concat.
    tail = _ndvi_ref(x[n_main:], weight, bias)
    return jnp.concatenate([out_main, tail], axis=0)


if __name__ == "__main__":
    key = jax.random.PRNGKey(0)
    k_x, k_w0, k_w1 = jax.random.split(key, 3)

    N, IN_F, OUT_F = 2128, 6, 2     # 16 full 128-sample blocks + 80-row tail

    # Row 0 ("NIR") weights clearly above row 1 ("RED") so both the NDVI
    # numerator and denominator stay well away from zero for positive inputs.
    w0 = jax.random.uniform(k_w0, (IN_F,), jnp.float32, 0.30, 0.50)
    w1 = jax.random.uniform(k_w1, (IN_F,), jnp.float32, 0.05, 0.15)
    weight = jnp.stack([w0, w1])                    # (2, 6)  nn.Linear layout
    bias = jnp.array([0.05, 0.02], jnp.float32)     # (2,)
    x = jax.random.uniform(k_x, (N, IN_F), jnp.float32, 0.5, 1.5)

    # tile_rows=8 -> 2 parallel grid steps over the 2048-sample main part,
    # plus the 80-sample ragged tail on the plain-XLA path.
    out = model_forward(x, weight, bias, tile_rows=8)
    out = jax.block_until_ready(out)

    # Pure-JAX reference: fc1 then NDVI over the two output channels.
    y = x @ weight.T + bias
    ref = (y[:, 0:1] - y[:, 1:2]) / (y[:, 0:1] + y[:, 1:2])
    assert out.shape == (N, 1)
    assert jnp.allclose(out, ref, atol=1e-5, rtol=1e-4), "mismatch vs reference"

    print("KERNEL_OK")
</pallas_src>

<mosaic_0001>
module attributes {stable_mosaic.version = 11 : i64} {
  func.func @fold_ndvi_kernel(%arg0: i32, %arg1: memref<2xf32, #tpu.memory_space<smem>>, %arg2: memref<8x768xf32, #tpu.memory_space<vmem>>, %arg3: memref<768x256xf32, #tpu.memory_space<vmem>>, %arg4: memref<8x128xf32, #tpu.memory_space<vmem>>) attributes {dimension_semantics = [#tpu.dimension_semantics<parallel>], iteration_bounds = array<i64: 2>, scalar_prefetch = 0 : i64, scratch_operands = 0 : i64, tpu.core_type = #tpu.core_type<tc>, window_params = [{transform_indices = @transform_0, window_bounds = array<i64: 2>}, {transform_indices = @transform_1, window_bounds = array<i64: 8, 768>}, {pipeline_mode = #tpu.pipeline_mode<synchronous>, transform_indices = @transform_2, window_bounds = array<i64: 768, 256>}, {transform_indices = @transform_3, window_bounds = array<i64: 8, 128>}]} {
    %c0 = arith.constant 0 : index
    %c0_0 = arith.constant 0 : index
    %0 = vector.load %arg2[%c0, %c0_0] : memref<8x768xf32, #tpu.memory_space<vmem>>, vector<8x768xf32>
    %c0_1 = arith.constant 0 : index
    %c0_2 = arith.constant 0 : index
    %1 = vector.load %arg3[%c0_1, %c0_2] : memref<768x256xf32, #tpu.memory_space<vmem>>, vector<768x256xf32>
    %cst = arith.constant dense<0.000000e+00> : vector<8x256xf32>
    %2 = tpu.matmul %0, %1, %cst {dimension_numbers = #tpu.dot_dimension_numbers<[1], [0], [0], [1], [0, 0, 1, 1], [], []>} : vector<8x768xf32>, vector<768x256xf32>, vector<8x256xf32> -> vector<8x256xf32>
    %3 = vector.extract_strided_slice %2 {offsets = [0, 0], sizes = [8, 128], strides = [1, 1]} : vector<8x256xf32> to vector<8x128xf32>
    %c0_3 = arith.constant 0 : index
    %4 = memref.load %arg1[%c0_3] : memref<2xf32, #tpu.memory_space<smem>>
    %5 = vector.broadcast %4 : f32 to vector<8x128xf32>
    %6 = arith.addf %3, %5 : vector<8x128xf32>
    %7 = vector.extract_strided_slice %2 {offsets = [0, 128], sizes = [8, 128], strides = [1, 1]} : vector<8x256xf32> to vector<8x128xf32>
    %c1 = arith.constant 1 : index
    %8 = memref.load %arg1[%c1] : memref<2xf32, #tpu.memory_space<smem>>
    %9 = vector.broadcast %8 : f32 to vector<8x128xf32>
    %10 = arith.addf %7, %9 : vector<8x128xf32>
    %11 = arith.divf %6, %10 : vector<8x128xf32>
    %c0_4 = arith.constant 0 : index
    %c0_5 = arith.constant 0 : index
    %12 = vector.load %arg4[%c0_4, %c0_5] : memref<8x128xf32, #tpu.memory_space<vmem>>, vector<8x128xf32>
    tpu.vector_store %arg4[%c0_4, %c0_5], %11 {strides = array<i32>} : memref<8x128xf32, #tpu.memory_space<vmem>>, vector<8x128xf32>,
    return
  }
  func.func @transform_0(%arg0: i32) -> i32 {
    %c0_i32 = arith.constant 0 : i32
    %c0_i32_0 = arith.constant 0 : i32
    return %c0_i32 : i32
  }
  func.func @transform_1(%arg0: i32) -> (i32, i32) {
    %c0_i32 = arith.constant 0 : i32
    %c0_i32_0 = arith.constant 0 : i32
    return %arg0, %c0_i32 : i32, i32
  }
  func.func @transform_2(%arg0: i32) -> (i32, i32) {
    %c0_i32 = arith.constant 0 : i32
    %c0_i32_0 = arith.constant 0 : i32
    %c0_i32_1 = arith.constant 0 : i32
    return %c0_i32, %c0_i32_0 : i32, i32
  }
  func.func @transform_3(%arg0: i32) -> (i32, i32) {
    %c0_i32 = arith.constant 0 : i32
    %c0_i32_0 = arith.constant 0 : i32
    return %arg0, %c0_i32 : i32, i32
  }
}

</mosaic_0001>

<llo_original>
// kernel: tpu_custom_call.1
$region0: #{tpu_custom_call.1}
  #allocation0 [shape = 'u32[]', space=smem, size = 0x4, offset = 0x4, fixed_abs, tag = 'smem constant byte address 0x4 - core index']
  #allocation1 [shape = 'u32[144,128]{1,0:T(1,128)}', space=vmem, size = 0x12000, scoped, tag = 'internal scratch']
  %s0 = inlined_call_operand.hbm [shape: f32[2], index: 0, kind: input, shape index: {}]
  %s1 = inlined_call_operand.hbm [shape: f32[16,768], index: 1, kind: input, shape index: {}]
  %s2 = inlined_call_operand.hbm [shape: f32[768,256], index: 2, kind: input, shape index: {}]
  %s3 = inlined_call_operand.hbm [shape: f32[16,128], index: 3, kind: output, shape index: {}]
  %s4 = sld [smem:[#allocation0]]
  $region57: #{tpu_custom_call.1} parent=0
    _
  %s6 = ssub.s32 1, %s4
  %s7 = scalar_select 0, %s6, %s4
  $region1: #{tpu_custom_call.1} parent=0
    #allocation2 [shape = 'u8[512]{0}', space=smem, size = 0x200, scoped, tag = 'input window, operand 0, single buffered']
    #allocation3 [shape = 's32[2]{0}', space=sflag, size = 0x8, scoped, tag = 'scoped memory for tpu_custom_call.1']
    #allocation4 [shape = 's32[2]{0}', space=sflag, size = 0x8, scoped, tag = 'scoped memory for tpu_custom_call.1']
    #allocation5 [shape = 's32[2]{0}', space=sflag, size = 0x8, scoped, tag = 'scoped memory for tpu_custom_call.1']
    #allocation6 [shape = 'u8[49152]{0}', space=vmem, size = 0xc000, scoped, tag = 'input window, operand 1']
    #allocation7 [shape = 'u8[786432]{0}', space=vmem, size = 0xc0000, scoped, tag = 'input window, operand 2, single buffered']
    #allocation8 [shape = 's32[1]{0}', space=sflag, size = 0x4, scoped, tag = 'scoped memory for tpu_custom_call.1']
    #allocation9 [shape = 'u8[8192]{0}', space=vmem, size = 0x2000, scoped, tag = 'output window, operand 0']
    %8 = vsyncpa [#allocation5], 0
    %9 = vsyncpa [#allocation3], 0
    %s10 = scalar_lea.sflag [#allocation3], 1
    %11 = vsyncpa %s10, 0
    %12 = vsyncpa [#allocation8], 0
    %13 = vsyncpa [#allocation4], 0
    %s14 = scalar_lea.sflag [#allocation4], 1
    %15 = vsyncpa %s14, 0
    loop: start=0, step=1, limit=4
    $region2: #{tpu_custom_call.1} parent=1 // loop_pre_header
      _
    $region3: #{tpu_custom_call.1} parent=1 // loop_header
      %s17 = sphi 0, %s21
      %p18 = scmp.ge.s32.totalorder %s17, 4
      %s25 = sphi 0, %s25
      %s27 = sphi 0, %s25
      %s28 = sphi 0, %s27
      %s42 = sphi 0, %s28
      %s48 = sphi 0, %s50
      %s51 = sphi 0, %s48
      %s52 = sphi 0, %s51
      %s68 = sphi 0, %s52
      %s72 = sphi 0, %s72
      %s74 = sphi 0, %s72
      %s75 = sphi 0, %s74
      %s89 = sphi 0, %s75
      %s95 = sphi 0, %s97
      %s98 = sphi 0, %s95
      %s99 = sphi 0, %s98
      %s115 = sphi 0, %s99
    $region4: #{tpu_custom_call.1} parent=1 // loop_header_branch
      %20 = sbr.rel (%p18) target = $region8
    $region5: #{tpu_custom_call.1} parent=1 // loop_body
      %s22 = ssub.s32 %s17, 1
      %s23 = ssub.s32 %s17, 2
      %s24 = sadd.s32 %s17, 1
      %s26 = sadd.s32 %s25, 1
      %p29 = scmp.eq.s32.totalorder %s17, 1
      %p30 = scmp.ne.s32.totalorder %s25, %s27
      %p31 = scmp.eq.s32.totalorder %s17, 0
      %p32 = por %p30, %p31
      %p33 = scmp.ne.s32.totalorder %s25, %s27
      %p34 = scmp.eq.s32.totalorder %s22, 1
      %p35 = por %p33, %p34
      %p36 = scmp.ne.s32.totalorder %s27, %s28
      %p37 = scmp.eq.s32.totalorder %s22, 0
      %p38 = por %p36, %p37
      %p39 = scmp.ne.s32.totalorder %s27, %s28
      %p40 = scmp.eq.s32.totalorder %s23, 1
      %p41 = por %p39, %p40
      %p43 = scmp.ne.s32.totalorder %s28, %s42
      %p44 = scmp.eq.s32.totalorder %s23, 0
      %p45 = por %p43, %p44
      %s46 = ssub.s32 %s17, %s24
      %p47 = scmp.eq.s32.totalorder %s46, 0
      %s49 = sadd.s32 %s48, 1
      %s50 = scalar_select %p47, %s48, %s49
      %p53 = pneg %p47
      %p54 = scmp.eq.s32.totalorder %s17, 1
      %p55 = por %p53, %p54
      %p56 = scmp.ne.s32.totalorder %s48, %s51
      %p57 = scmp.eq.s32.totalorder %s17, 0
      %p58 = por %p56, %p57
      %p59 = scmp.ne.s32.totalorder %s48, %s51
      %p60 = scmp.eq.s32.totalorder %s22, 1
      %p61 = por %p59, %p60
      %p62 = scmp.ne.s32.totalorder %s51, %s52
      %p63 = scmp.eq.s32.totalorder %s22, 0
      %p64 = por %p62, %p63
      %p65 = scmp.ne.s32.totalorder %s51, %s52
      %p66 = scmp.eq.s32.totalorder %s23, 1
      %p67 = por %p65, %p66
      %p69 = scmp.ne.s32.totalorder %s52, %s68
      %p70 = scmp.eq.s32.totalorder %s23, 0
      %p71 = por %p69, %p70
      %s73 = sadd.s32 %s72, 1
      %p76 = scmp.eq.s32.totalorder %s17, 1
      %p77 = scmp.ne.s32.totalorder %s72, %s74
      %p78 = scmp.eq.s32.totalorder %s17, 0
      %p79 = por %p77, %p78
      %p80 = scmp.ne.s32.totalorder %s72, %s74
      %p81 = scmp.eq.s32.totalorder %s22, 1
      %p82 = por %p80, %p81
      %p83 = scmp.ne.s32.totalorder %s74, %s75
      %p84 = scmp.eq.s32.totalorder %s22, 0
      %p85 = por %p83, %p84
      %p86 = scmp.ne.s32.totalorder %s74, %s75
      %p87 = scmp.eq.s32.totalorder %s23, 1
      %p88 = por %p86, %p87
      %p90 = scmp.ne.s32.totalorder %s75, %s89
      %p91 = scmp.eq.s32.totalorder %s23, 0
      %p92 = por %p90, %p91
      %s93 = ssub.s32 %s17, %s24
      %p94 = scmp.eq.s32.totalorder %s93, 0
      %s96 = sadd.s32 %s95, 1
      %s97 = scalar_select %p94, %s95, %s96
      %p100 = pneg %p94
      %p101 = scmp.eq.s32.totalorder %s17, 1
      %p102 = por %p100, %p101
      %p103 = scmp.ne.s32.totalorder %s95, %s98
      %p104 = scmp.eq.s32.totalorder %s17, 0
      %p105 = por %p103, %p104
      %p106 = scmp.ne.s32.totalorder %s95, %s98
      %p107 = scmp.eq.s32.totalorder %s22, 1
      %p108 = por %p106, %p107
      %p109 = scmp.ne.s32.totalorder %s98, %s99
      %p110 = scmp.eq.s32.totalorder %s22, 0
      %p111 = por %p109, %p110
      %p112 = scmp.ne.s32.totalorder %s98, %s99
      %p113 = scmp.eq.s32.totalorder %s23, 1
      %p114 = por %p112, %p113
      %p116 = scmp.ne.s32.totalorder %s99, %s115
      %p117 = scmp.eq.s32.totalorder %s23, 0
      %p118 = por %p116, %p117
      %p119 = scmp.le.s32.totalorder 1, %s17
      %p120 = scmp.lt.s32.totalorder %s17, 3
      %p121 = pnand %p119, %p120
      %p122 = pneg %p121
      // Predicated region
      $region9: #{tpu_custom_call.1} parent=5 // pred_check
        _
      $region10: #{tpu_custom_call.1} parent=5 // pred_check_branch
        %124 = sbr.rel (%p121) target = $region12
      $region11: #{tpu_custom_call.1} parent=5 // pred_region
        %s125 = ssub.s32 %s17, 1
        // Predicated region
        $region13: #{tpu_custom_call.1} parent=11 // pred_check
          %p126 = pneg %p38
        $region14: #{tpu_custom_call.1} parent=11 // pred_check_branch
          %128 = sbr.rel (%p126) target = $region16
        $region15: #{tpu_custom_call.1} parent=11 // pred_region
          %s130 = ssub.s32 16, 16
          %131 = vsyncadd [#allocation5], %s130
          %134 = dma.hbm_to_smem %s0, 16, [#allocation2], [#allocation5]
        $region16: #{tpu_custom_call.1} parent=11 // pred_fallthru
          _
        // Predicated region
        $region17: #{tpu_custom_call.1} parent=11 // pred_check
          %p135 = pneg %p85
        $region18: #{tpu_custom_call.1} parent=11 // pred_check_branch
          %137 = sbr.rel (%p135) target = $region20
        $region19: #{tpu_custom_call.1} parent=11 // pred_region
          %s139 = ssub.s32 24576, 24576
          %140 = vsyncadd [#allocation8], %s139
          %s141 = sshll.u32 [#allocation7], 4
          %s142 = int_to_ptr.vmem [resolvable:$true] %s141
          %147 = dma.hbm_to_vmem [thread:$0]  %s2, 24576, %s142, [#allocation8], 256, 256, 16
        $region20: #{tpu_custom_call.1} parent=11 // pred_fallthru
          _
      $region12: #{tpu_custom_call.1} parent=5 // pred_fallthru
        _
      %p148 = scmp.lt.s32.totalorder %s17, 2
      // Predicated region
      $region21: #{tpu_custom_call.1} parent=5 // pred_check
        %p149 = pneg %p148
      $region22: #{tpu_custom_call.1} parent=5 // pred_check_branch
        %151 = sbr.rel (%p149) target = $region24
      $region23: #{tpu_custom_call.1} parent=5 // pred_region
        // Predicated region
        $region25: #{tpu_custom_call.1} parent=23 // pred_check
          %p152 = pneg %p58
        $region26: #{tpu_custom_call.1} parent=23 // pred_check_branch
          %154 = sbr.rel (%p152) target = $region28
        $region27: #{tpu_custom_call.1} parent=23 // pred_region
          %s155 = sand.u32 %s48, 1
          %s156 = scalar_lea.sflag [#allocation3], %s155
          %s157 = sand.u32 %s48, 1
          %s158 = smul.addr %s157, 48
          %s159 = scalar_lea.vmem [#allocation6], %s158
          %s161 = ssub.s32 768, 768
          %162 = vsyncadd %s156, %s161
          %s163 = smul.addr %s17, 6
          %s164 = smul.addr %s163, 128
          %s165 = scalar_lea.hbm %s1, %s164
          %s167 = sshll.u32 %s159, 4
          %s168 = int_to_ptr.vmem [resolvable:$true] %s167
          %170 = dma.hbm_to_vmem [thread:$0]  %s165, 768, %s168, %s156
        $region28: #{tpu_custom_call.1} parent=23 // pred_fallthru
          _
      $region24: #{tpu_custom_call.1} parent=5 // pred_fallthru
        _
      %p171 = scmp.le.s32.totalorder 1, %s17
      %p172 = scmp.lt.s32.totalorder %s17, 3
      %p173 = pnand %p171, %p172
      %p174 = pneg %p173
      // Predicated region
      $region29: #{tpu_custom_call.1} parent=5 // pred_check
        _
      $region30: #{tpu_custom_call.1} parent=5 // pred_check_branch
        %176 = sbr.rel (%p173) target = $region32
      $region31: #{tpu_custom_call.1} parent=5 // pred_region
        %s177 = ssub.s32 %s17, 1
        // Predicated region
        $region33: #{tpu_custom_call.1} parent=31 // pred_check
          %p178 = pneg %p38
        $region34: #{tpu_custom_call.1} parent=31 // pred_check_branch
          %180 = sbr.rel (%p178) target = $region36
        $region35: #{tpu_custom_call.1} parent=31 // pred_region
          %181 = dma.done [#allocation5], 16
        $region36: #{tpu_custom_call.1} parent=31 // pred_fallthru
          _
        %s182 = sand.u32 %s51, 1
        %s183 = scalar_lea.sflag [#allocation3], %s182
        %s184 = sand.u32 %s51, 1
        %s185 = smul.addr %s184, 48
        %s186 = scalar_lea.vmem [#allocation6], %s185
        // Predicated region
        $region37: #{tpu_custom_call.1} parent=31 // pred_check
          %p187 = pneg %p64
        $region38: #{tpu_custom_call.1} parent=31 // pred_check_branch
          %189 = sbr.rel (%p187) target = $region40
        $region39: #{tpu_custom_call.1} parent=31 // pred_region
          %190 = dma.done %s183, 768
        $region40: #{tpu_custom_call.1} parent=31 // pred_fallthru
          _
        // Predicated region
        $region41: #{tpu_custom_call.1} parent=31 // pred_check
          %p191 = pneg %p85
        $region42: #{tpu_custom_call.1} parent=31 // pred_check_branch
          %193 = sbr.rel (%p191) target = $region44
        $region43: #{tpu_custom_call.1} parent=31 // pred_region
          %194 = dma.done [#allocation8], 24576
        $region44: #{tpu_custom_call.1} parent=31 // pred_fallthru
          _
        %195 = sfence
        %p196 = pneg %p38
        %p197 = pneg %p35
        %s198 = sand.u32 %s51, 1
        %s199 = scalar_lea.sflag [#allocation3], %s198
        %s200 = sand.u32 %s51, 1
        %s201 = smul.addr %s200, 48
        %s202 = scalar_lea.vmem [#allocation6], %s201
        %p203 = pneg %p64
        %p204 = pneg %p61
        %p205 = pneg %p85
        %p206 = pneg %p82
        %p207 = pneg %p111
        %p208 = pneg %p108
        %s209 = sand.u32 %s98, 1
        %s210 = scalar_lea.sflag [#allocation4], %s209
        %s211 = sand.u32 %s98, 1
        %s212 = smul.addr %s211, 8
        %s213 = scalar_lea.vmem [#allocation9], %s212
        %v214 = vld [vmem:[%s186] sm:$0xff]
        %v215 = vld [vmem:[%s186 + $0x8] sm:$0xff]
        %v216 = vld [vmem:[%s186 + $0x10] sm:$0xff]
        %v217 = vld [vmem:[%s186 + $0x18] sm:$0xff]
        %v218 = vld [vmem:[%s186 + $0x20] sm:$0xff]
        %v219 = vld [vmem:[%s186 + $0x28] sm:$0xff]
        %v220 = vld [vmem:[#allocation7] sm:$0xff]
        %v221 = vld [vmem:[#allocation7 + $0x8] sm:$0xff]
        %v222 = vld [vmem:[#allocation7 + $0x10] sm:$0xff]
        %v223 = vld [vmem:[#allocation7 + $0x18] sm:$0xff]
        %v224 = vld [vmem:[#allocation7 + $0x20] sm:$0xff]
        %v225 = vld [vmem:[#allocation7 + $0x28] sm:$0xff]
        %v226 = vld [vmem:[#allocation7 + $0x30] sm:$0xff]
        %v227 = vld [vmem:[#allocation7 + $0x38] sm:$0xff]
        %v228 = vld [vmem:[#allocation7 + $0x40] sm:$0xff]
        %v229 = vld [vmem:[#allocation7 + $0x48] sm:$0xff]
        %v230 = vld [vmem:[#allocation7 + $0x50] sm:$0xff]
        %v231 = vld [vmem:[#allocation7 + $0x58] sm:$0xff]
        %v232 = vld [vmem:[#allocation7 + $0x60] sm:$0xff]
        %v233 = vld [vmem:[#allocation7 + $0x68] sm:$0xff]
        %v234 = vld [vmem:[#allocation7 + $0x70] sm:$0xff]
        %v235 = vld [vmem:[#allocation7 + $0x78] sm:$0xff]
        %v236 = vld [vmem:[#allocation7 + $0x80] sm:$0xff]
        %v237 = vld [vmem:[#allocation7 + $0x88] sm:$0xff]
        %v238 = vld [vmem:[#allocation7 + $0x90] sm:$0xff]
        %v239 = vld [vmem:[#allocation7 + $0x98] sm:$0xff]
        %v240 = vld [vmem:[#allocation7 + $0xa0] sm:$0xff]
        %v241 = vld [vmem:[#allocation7 + $0xa8] sm:$0xff]
        %v242 = vld [vmem:[#allocation7 + $0xb0] sm:$0xff]
        %v243 = vld [vmem:[#allocation7 + $0xb8] sm:$0xff]
        %v244 = vld [vmem:[#allocation7 + $0xc0] sm:$0xff]
        %v245 = vld [vmem:[#allocation7 + $0xc8] sm:$0xff]
        %v246 = vld [vmem:[#allocation7 + $0xd0] sm:$0xff]
        %v247 = vld [vmem:[#allocation7 + $0xd8] sm:$0xff]
        %v248 = vld [vmem:[#allocation7 + $0xe0] sm:$0xff]
        %v249 = vld [vmem:[#allocation7 + $0xe8] sm:$0xff]
        %v250 = vld [vmem:[#allocation7 + $0xf0] sm:$0xff]
        %v251 = vld [vmem:[#allocation7 + $0xf8] sm:$0xff]
        %v252 = vld [vmem:[#allocation7 + $0x100] sm:$0xff]
        %v253 = vld [vmem:[#allocation7 + $0x108] sm:$0xff]
        %v254 = vld [vmem:[#allocation7 + $0x110] sm:$0xff]
        %v255 = vld [vmem:[#allocation7 + $0x118] sm:$0xff]
        %v256 = vld [vmem:[#allocation7 + $0x120] sm:$0xff]
        %v257 = vld [vmem:[#allocation7 + $0x128] sm:$0xff]
        %v258 = vld [vmem:[#allocation7 + $0x130] sm:$0xff]
        %v259 = vld [vmem:[#allocation7 + $0x138] sm:$0xff]
        %v260 = vld [vmem:[#allocation7 + $0x140] sm:$0xff]
        %v261 = vld [vmem:[#allocation7 + $0x148] sm:$0xff]
        %v262 = vld [vmem:[#allocation7 + $0x150] sm:$0xff]
        %v263 = vld [vmem:[#allocation7 + $0x158] sm:$0xff]
        %v264 = vld [vmem:[#allocation7 + $0x160] sm:$0xff]
        %v265 = vld [vmem:[#allocation7 + $0x168] sm:$0xff]
        %v266 = vld [vmem:[#allocation7 + $0x170] sm:$0xff]
        %v267 = vld [vmem:[#allocation7 + $0x178] sm:$0xff]
        %v268 = vld [vmem:[#allocation7 + $0x180] sm:$0xff]
        %v269 = vld [vmem:[#allocation7 + $0x188] sm:$0xff]
        %v270 = vld [vmem:[#allocation7 + $0x190] sm:$0xff]
        %v271 = vld [vmem:[#allocation7 + $0x198] sm:$0xff]
        %v272 = vld [vmem:[#allocation7 + $0x1a0] sm:$0xff]
        %v273 = vld [vmem:[#allocation7 + $0x1a8] sm:$0xff]
        %v274 = vld [vmem:[#allocation7 + $0x1b0] sm:$0xff]
        %v275 = vld [vmem:[#allocation7 + $0x1b8] sm:$0xff]
        %v276 = vld [vmem:[#allocation7 + $0x1c0] sm:$0xff]
        %v277 = vld [vmem:[#allocation7 + $0x1c8] sm:$0xff]
        %v278 = vld [vmem:[#allocation7 + $0x1d0] sm:$0xff]
        %v279 = vld [vmem:[#allocation7 + $0x1d8] sm:$0xff]
        %v280 = vld [vmem:[#allocation7 + $0x1e0] sm:$0xff]
        %v281 = vld [vmem:[#allocation7 + $0x1e8] sm:$0xff]
        %v282 = vld [vmem:[#allocation7 + $0x1f0] sm:$0xff]
        %v283 = vld [vmem:[#allocation7 + $0x1f8] sm:$0xff]
        %v284 = vld [vmem:[#allocation7 + $0x200] sm:$0xff]
        %v285 = vld [vmem:[#allocation7 + $0x208] sm:$0xff]
        %v286 = vld [vmem:[#allocation7 + $0x210] sm:$0xff]
        %v287 = vld [vmem:[#allocation7 + $0x218] sm:$0xff]
        %v288 = vld [vmem:[#allocation7 + $0x220] sm:$0xff]
        %v289 = vld [vmem:[#allocation7 + $0x228] sm:$0xff]
        %v290 = vld [vmem:[#allocation7 + $0x230] sm:$0xff]
        %v291 = vld [vmem:[#allocation7 + $0x238] sm:$0xff]
        %v292 = vld [vmem:[#allocation7 + $0x240] sm:$0xff]
        %v293 = vld [vmem:[#allocation7 + $0x248] sm:$0xff]
        %v294 = vld [vmem:[#allocation7 + $0x250] sm:$0xff]
        %v295 = vld [vmem:[#allocation7 + $0x258] sm:$0xff]
        %v296 = vld [vmem:[#allocation7 + $0x260] sm:$0xff]
        %v297 = vld [vmem:[#allocation7 + $0x268] sm:$0xff]
        %v298 = vld [vmem:[#allocation7 + $0x270] sm:$0xff]
        %v299 = vld [vmem:[#allocation7 + $0x278] sm:$0xff]
        %v300 = vld [vmem:[#allocation7 + $0x280] sm:$0xff]
        %v301 = vld [vmem:[#allocation7 + $0x288] sm:$0xff]
        %v302 = vld [vmem:[#allocation7 + $0x290] sm:$0xff]
        %v303 = vld [vmem:[#allocation7 + $0x298] sm:$0xff]
        %v304 = vld [vmem:[#allocation7 + $0x2a0] sm:$0xff]
        %v305 = vld [vmem:[#allocation7 + $0x2a8] sm:$0xff]
        %v306 = vld [vmem:[#allocation7 + $0x2b0] sm:$0xff]
        %v307 = vld [vmem:[#allocation7 + $0x2b8] sm:$0xff]
        %v308 = vld [vmem:[#allocation7 + $0x2c0] sm:$0xff]
        %v309 = vld [vmem:[#allocation7 + $0x2c8] sm:$0xff]
        %v310 = vld [vmem:[#allocation7 + $0x2d0] sm:$0xff]
        %v311 = vld [vmem:[#allocation7 + $0x2d8] sm:$0xff]
        %v312 = vld [vmem:[#allocation7 + $0x2e0] sm:$0xff]
        %v313 = vld [vmem:[#allocation7 + $0x2e8] sm:$0xff]
        %v314 = vld [vmem:[#allocation7 + $0x2f0] sm:$0xff]
        %v315 = vld [vmem:[#allocation7 + $0x2f8] sm:$0xff]
        %v316 = vld [vmem:[#allocation7 + $0x300] sm:$0xff]
        %v317 = vld [vmem:[#allocation7 + $0x308] sm:$0xff]
        %v318 = vld [vmem:[#allocation7 + $0x310] sm:$0xff]
        %v319 = vld [vmem:[#allocation7 + $0x318] sm:$0xff]
        %v320 = vld [vmem:[#allocation7 + $0x320] sm:$0xff]
        %v321 = vld [vmem:[#allocation7 + $0x328] sm:$0xff]
        %v322 = vld [vmem:[#allocation7 + $0x330] sm:$0xff]
        %v323 = vld [vmem:[#allocation7 + $0x338] sm:$0xff]
        %v324 = vld [vmem:[#allocation7 + $0x340] sm:$0xff]
        %v325 = vld [vmem:[#allocation7 + $0x348] sm:$0xff]
        %v326 = vld [vmem:[#allocation7 + $0x350] sm:$0xff]
        %v327 = vld [vmem:[#allocation7 + $0x358] sm:$0xff]
        %v328 = vld [vmem:[#allocation7 + $0x360] sm:$0xff]
        %v329 = vld [vmem:[#allocation7 + $0x368] sm:$0xff]
        %v330 = vld [vmem:[#allocation7 + $0x370] sm:$0xff]
        %v331 = vld [vmem:[#allocation7 + $0x378] sm:$0xff]
        %v332 = vld [vmem:[#allocation7 + $0x380] sm:$0xff]
        %v333 = vld [vmem:[#allocation7 + $0x388] sm:$0xff]
        %v334 = vld [vmem:[#allocation7 + $0x390] sm:$0xff]
        %v335 = vld [vmem:[#allocation7 + $0x398] sm:$0xff]
        %v336 = vld [vmem:[#allocation7 + $0x3a0] sm:$0xff]
        %v337 = vld [vmem:[#allocation7 + $0x3a8] sm:$0xff]
        %v338 = vld [vmem:[#allocation7 + $0x3b0] sm:$0xff]
        %v339 = vld [vmem:[#allocation7 + $0x3b8] sm:$0xff]
        %v340 = vld [vmem:[#allocation7 + $0x3c0] sm:$0xff]
        %v341 = vld [vmem:[#allocation7 + $0x3c8] sm:$0xff]
        %v342 = vld [vmem:[#allocation7 + $0x3d0] sm:$0xff]
        %v343 = vld [vmem:[#allocation7 + $0x3d8] sm:$0xff]
        %v344 = vld [vmem:[#allocation7 + $0x3e0] sm:$0xff]
        %v345 = vld [vmem:[#allocation7 + $0x3e8] sm:$0xff]
        %v346 = vld [vmem:[#allocation7 + $0x3f0] sm:$0xff]
        %v347 = vld [vmem:[#allocation7 + $0x3f8] sm:$0xff]
        %v348 = vld [vmem:[#allocation7 + $0x400] sm:$0xff]
        %v349 = vld [vmem:[#allocation7 + $0x408] sm:$0xff]
        %v350 = vld [vmem:[#allocation7 + $0x410] sm:$0xff]
        %v351 = vld [vmem:[#allocation7 + $0x418] sm:$0xff]
        %v352 = vld [vmem:[#allocation7 + $0x420] sm:$0xff]
        %v353 = vld [vmem:[#allocation7 + $0x428] sm:$0xff]
        %v354 = vld [vmem:[#allocation7 + $0x430] sm:$0xff]
        %v355 = vld [vmem:[#allocation7 + $0x438] sm:$0xff]
        %v356 = vld [vmem:[#allocation7 + $0x440] sm:$0xff]
        %v357 = vld [vmem:[#allocation7 + $0x448] sm:$0xff]
        %v358 = vld [vmem:[#allocation7 + $0x450] sm:$0xff]
        %v359 = vld [vmem:[#allocation7 + $0x458] sm:$0xff]
        %v360 = vld [vmem:[#allocation7 + $0x460] sm:$0xff]
        %v361 = vld [vmem:[#allocation7 + $0x468] sm:$0xff]
        %v362 = vld [vmem:[#allocation7 + $0x470] sm:$0xff]
        %v363 = vld [vmem:[#allocation7 + $0x478] sm:$0xff]
        %v364 = vld [vmem:[#allocation7 + $0x480] sm:$0xff]
        %v365 = vld [vmem:[#allocation7 + $0x488] sm:$0xff]
        %v366 = vld [vmem:[#allocation7 + $0x490] sm:$0xff]
        %v367 = vld [vmem:[#allocation7 + $0x498] sm:$0xff]
        %v368 = vld [vmem:[#allocation7 + $0x4a0] sm:$0xff]
        %v369 = vld [vmem:[#allocation7 + $0x4a8] sm:$0xff]
        %v370 = vld [vmem:[#allocation7 + $0x4b0] sm:$0xff]
        %v371 = vld [vmem:[#allocation7 + $0x4b8] sm:$0xff]
        %v372 = vld [vmem:[#allocation7 + $0x4c0] sm:$0xff]
        %v373 = vld [vmem:[#allocation7 + $0x4c8] sm:$0xff]
        %v374 = vld [vmem:[#allocation7 + $0x4d0] sm:$0xff]
        %v375 = vld [vmem:[#allocation7 + $0x4d8] sm:$0xff]
        %v376 = vld [vmem:[#allocation7 + $0x4e0] sm:$0xff]
        %v377 = vld [vmem:[#allocation7 + $0x4e8] sm:$0xff]
        %v378 = vld [vmem:[#allocation7 + $0x4f0] sm:$0xff]
        %v379 = vld [vmem:[#allocation7 + $0x4f8] sm:$0xff]
        %v380 = vld [vmem:[#allocation7 + $0x500] sm:$0xff]
        %v381 = vld [vmem:[#allocation7 + $0x508] sm:$0xff]
        %v382 = vld [vmem:[#allocation7 + $0x510] sm:$0xff]
        %v383 = vld [vmem:[#allocation7 + $0x518] sm:$0xff]
        %v384 = vld [vmem:[#allocation7 + $0x520] sm:$0xff]
        %v385 = vld [vmem:[#allocation7 + $0x528] sm:$0xff]
        %v386 = vld [vmem:[#allocation7 + $0x530] sm:$0xff]
        %v387 = vld [vmem:[#allocation7 + $0x538] sm:$0xff]
        %v388 = vld [vmem:[#allocation7 + $0x540] sm:$0xff]
        %v389 = vld [vmem:[#allocation7 + $0x548] sm:$0xff]
        %v390 = vld [vmem:[#allocation7 + $0x550] sm:$0xff]
        %v391 = vld [vmem:[#allocation7 + $0x558] sm:$0xff]
        %v392 = vld [vmem:[#allocation7 + $0x560] sm:$0xff]
        %v393 = vld [vmem:[#allocation7 + $0x568] sm:$0xff]
        %v394 = vld [vmem:[#allocation7 + $0x570] sm:$0xff]
        %v395 = vld [vmem:[#allocation7 + $0x578] sm:$0xff]
        %v396 = vld [vmem:[#allocation7 + $0x580] sm:$0xff]
        %v397 = vld [vmem:[#allocation7 + $0x588] sm:$0xff]
        %v398 = vld [vmem:[#allocation7 + $0x590] sm:$0xff]
        %v399 = vld [vmem:[#allocation7 + $0x598] sm:$0xff]
        %v400 = vld [vmem:[#allocation7 + $0x5a0] sm:$0xff]
        %v401 = vld [vmem:[#allocation7 + $0x5a8] sm:$0xff]
        %v402 = vld [vmem:[#allocation7 + $0x5b0] sm:$0xff]
        %v403 = vld [vmem:[#allocation7 + $0x5b8] sm:$0xff]
        %v404 = vld [vmem:[#allocation7 + $0x5c0] sm:$0xff]
        %v405 = vld [vmem:[#allocation7 + $0x5c8] sm:$0xff]
        %v406 = vld [vmem:[#allocation7 + $0x5d0] sm:$0xff]
        %v407 = vld [vmem:[#allocation7 + $0x5d8] sm:$0xff]
        %v408 = vld [vmem:[#allocation7 + $0x5e0] sm:$0xff]
        %v409 = vld [vmem:[#allocation7 + $0x5e8] sm:$0xff]
        %v410 = vld [vmem:[#allocation7 + $0x5f0] sm:$0xff]
        %v411 = vld [vmem:[#allocation7 + $0x5f8] sm:$0xff]
        %412 = vmatprep.subr.mxu0 %v221
        %413 = vmatpush1.msra.mxu0 %v220
        %414 = vmatprep.subr.mxu0 %v223
        %415 = vmatpush1.msra.mxu0 %v222
        %416 = vmatprep.subr.mxu0 %v225
        %417 = vmatpush1.msra.mxu0 %v224
        %418 = vmatprep.subr.mxu0 %v227
        %419 = vmatpush1.msra.mxu0 %v226
        %420 = vmatprep.subr.mxu0 %v229
        %421 = vmatpush1.msra.mxu0 %v228
        %422 = vmatprep.subr.mxu0 %v231
        %423 = vmatpush1.msra.mxu0 %v230
        %424 = vmatprep.subr.mxu0 %v233
        %425 = vmatpush1.msra.mxu0 %v232
        %426 = vmatprep.subr.mxu0 %v235
        %427 = vmatpush1.msra.mxu0 %v234
        %428 = vmatprep.subr.mxu0 %v237
        %429 = vmatpush1.msra.mxu0 %v236
        %430 = vmatprep.subr.mxu0 %v239
        %431 = vmatpush1.msra.mxu0 %v238
        %432 = vmatprep.subr.mxu0 %v241
        %433 = vmatpush1.msra.mxu0 %v240
        %434 = vmatprep.subr.mxu0 %v243
        %435 = vmatpush1.msra.mxu0 %v242
        %436 = vmatprep.subr.mxu0 %v245
        %437 = vmatpush1.msra.mxu0 %v244
        %438 = vmatprep.subr.mxu0 %v247
        %439 = vmatpush1.msra.mxu0 %v246
        %440 = vmatprep.subr.mxu0 %v249
        %441 = vmatpush1.msra.mxu0 %v248
        %442 = vmatprep.subr.mxu0 %v251
        %443 = vmatpush1.msra.mxu0 %v250
        %444 = vmatprep.subr.mxu0 %v253
        %445 = vmatpush1.msra.mxu0 %v252
        %446 = vmatprep.subr.mxu0 %v255
        %447 = vmatpush1.msra.mxu0 %v254
        %448 = vmatprep.subr.mxu0 %v257
        %449 = vmatpush1.msra.mxu0 %v256
        %450 = vmatprep.subr.mxu0 %v259
        %451 = vmatpush1.msra.mxu0 %v258
        %452 = vmatprep.subr.mxu0 %v261
        %453 = vmatpush1.msra.mxu0 %v260
        %454 = vmatprep.subr.mxu0 %v263
        %455 = vmatpush1.msra.mxu0 %v262
        %456 = vmatprep.subr.mxu0 %v265
        %457 = vmatpush1.msra.mxu0 %v264
        %458 = vmatprep.subr.mxu0 %v267
        %459 = vmatpush1.msra.mxu0 %v266
        %460 = vmatprep.subr.mxu0 %v269
        %461 = vmatpush1.msra.mxu0 %v268
        %462 = vmatprep.subr.mxu0 %v271
        %463 = vmatpush1.msra.mxu0 %v270
        %464 = vmatprep.subr.mxu0 %v273
        %465 = vmatpush1.msra.mxu0 %v272
        %466 = vmatprep.subr.mxu0 %v275
        %467 = vmatpush1.msra.mxu0 %v274
        %468 = vmatprep.subr.mxu0 %v277
        %469 = vmatpush1.msra.mxu0 %v276
        %470 = vmatprep.subr.mxu0 %v279
        %471 = vmatpush1.msra.mxu0 %v278
        %472 = vmatprep.subr.mxu0 %v281
        %473 = vmatpush1.msra.mxu0 %v280
        %474 = vmatprep.subr.mxu0 %v283
        %475 = vmatpush1.msra.mxu0 %v282
        %476 = vmatprep.mubr.f32.mxu0 %v215
        %477 = vmatmul.mubr.f32.gmra.mrb[0].mxu0 %v214
        %v478 = vpop.f32.mrb[0].mxu0
        %v479 = vadd.f32 0.0, %v478
        %v480 = vpop.f32.mrb[0].mxu0
        %v481 = vadd.f32 0.0, %v480
        %482 = vdwg.mxu0
        %483 = vmatprep.subr.mxu0 %v285
        %484 = vmatpush1.msra.mxu0 %v284
        %485 = vmatprep.subr.mxu0 %v287
        %486 = vmatpush1.msra.mxu0 %v286
        %487 = vmatprep.subr.mxu0 %v289
        %488 = vmatpush1.msra.mxu0 %v288
        %489 = vmatprep.subr.mxu0 %v291
        %490 = vmatpush1.msra.mxu0 %v290
        %491 = vmatprep.subr.mxu0 %v293
        %492 = vmatpush1.msra.mxu0 %v292
        %493 = vmatprep.subr.mxu0 %v295
        %494 = vmatpush1.msra.mxu0 %v294
        %495 = vmatprep.subr.mxu0 %v297
        %496 = vmatpush1.msra.mxu0 %v296
        %497 = vmatprep.subr.mxu0 %v299
        %498 = vmatpush1.msra.mxu0 %v298
        %499 = vmatprep.subr.mxu0 %v301
        %500 = vmatpush1.msra.mxu0 %v300
        %501 = vmatprep.subr.mxu0 %v303
        %502 = vmatpush1.msra.mxu0 %v302
        %503 = vmatprep.subr.mxu0 %v305
        %504 = vmatpush1.msra.mxu0 %v304
        %505 = vmatprep.subr.mxu0 %v307
        %506 = vmatpush1.msra.mxu0 %v306
        %507 = vmatprep.subr.mxu0 %v309
        %508 = vmatpush1.msra.mxu0 %v308
        %509 = vmatprep.subr.mxu0 %v311
        %510 = vmatpush1.msra.mxu0 %v310
        %511 = vmatprep.subr.mxu0 %v313
        %512 = vmatpush1.msra.mxu0 %v312
        %513 = vmatprep.subr.mxu0 %v315
        %514 = vmatpush1.msra.mxu0 %v314
        %515 = vmatprep.subr.mxu0 %v317
        %516 = vmatpush1.msra.mxu0 %v316
        %517 = vmatprep.subr.mxu0 %v319
        %518 = vmatpush1.msra.mxu0 %v318
        %519 = vmatprep.subr.mxu0 %v321
        %520 = vmatpush1.msra.mxu0 %v320
        %521 = vmatprep.subr.mxu0 %v323
        %522 = vmatpush1.msra.mxu0 %v322
        %523 = vmatprep.subr.mxu0 %v325
        %524 = vmatpush1.msra.mxu0 %v324
        %525 = vmatprep.subr.mxu0 %v327
        %526 = vmatpush1.msra.mxu0 %v326
        %527 = vmatprep.subr.mxu0 %v329
        %528 = vmatpush1.msra.mxu0 %v328
        %529 = vmatprep.subr.mxu0 %v331
        %530 = vmatpush1.msra.mxu0 %v330
        %531 = vmatprep.subr.mxu0 %v333
        %532 = vmatpush1.msra.mxu0 %v332
        %533 = vmatprep.subr.mxu0 %v335
        %534 = vmatpush1.msra.mxu0 %v334
        %535 = vmatprep.subr.mxu0 %v337
        %536 = vmatpush1.msra.mxu0 %v336
        %537 = vmatprep.subr.mxu0 %v339
        %538 = vmatpush1.msra.mxu0 %v338
        %539 = vmatprep.subr.mxu0 %v341
        %540 = vmatpush1.msra.mxu0 %v340
        %541 = vmatprep.subr.mxu0 %v343
        %542 = vmatpush1.msra.mxu0 %v342
        %543 = vmatprep.subr.mxu0 %v345
        %544 = vmatpush1.msra.mxu0 %v344
        %545 = vmatprep.subr.mxu0 %v347
        %546 = vmatpush1.msra.mxu0 %v346
        %547 = vmatprep.mubr.f32.mxu0 %v217
        %548 = vmatmul.mubr.f32.gmra.mrb[0].mxu0 %v216
        %v549 = vpop.f32.mrb[0].mxu0
        %v550 = vadd.f32 %v479, %v549
        %v551 = vpop.f32.mrb[0].mxu0
        %v552 = vadd.f32 %v481, %v551
        %553 = vdwg.mxu0
        %554 = vmatprep.subr.mxu0 %v349
        %555 = vmatpush1.msra.mxu0 %v348
        %556 = vmatprep.subr.mxu0 %v351
        %557 = vmatpush1.msra.mxu0 %v350
        %558 = vmatprep.subr.mxu0 %v353
        %559 = vmatpush1.msra.mxu0 %v352
        %560 = vmatprep.subr.mxu0 %v355
        %561 = vmatpush1.msra.mxu0 %v354
        %562 = vmatprep.subr.mxu0 %v357
        %563 = vmatpush1.msra.mxu0 %v356
        %564 = vmatprep.subr.mxu0 %v359
        %565 = vmatpush1.msra.mxu0 %v358
        %566 = vmatprep.subr.mxu0 %v361
        %567 = vmatpush1.msra.mxu0 %v360
        %568 = vmatprep.subr.mxu0 %v363
        %569 = vmatpush1.msra.mxu0 %v362
        %570 = vmatprep.subr.mxu0 %v365
        %571 = vmatpush1.msra.mxu0 %v364
        %572 = vmatprep.subr.mxu0 %v367
        %573 = vmatpush1.msra.mxu0 %v366
        %574 = vmatprep.subr.mxu0 %v369
        %575 = vmatpush1.msra.mxu0 %v368
        %576 = vmatprep.subr.mxu0 %v371
        %577 = vmatpush1.msra.mxu0 %v370
        %578 = vmatprep.subr.mxu0 %v373
        %579 = vmatpush1.msra.mxu0 %v372
        %580 = vmatprep.subr.mxu0 %v375
        %581 = vmatpush1.msra.mxu0 %v374
        %582 = vmatprep.subr.mxu0 %v377
        %583 = vmatpush1.msra.mxu0 %v376
        %584 = vmatprep.subr.mxu0 %v379
        %585 = vmatpush1.msra.mxu0 %v378
        %586 = vmatprep.subr.mxu0 %v381
        %587 = vmatpush1.msra.mxu0 %v380
        %588 = vmatprep.subr.mxu0 %v383
        %589 = vmatpush1.msra.mxu0 %v382
        %590 = vmatprep.subr.mxu0 %v385
        %591 = vmatpush1.msra.mxu0 %v384
        %592 = vmatprep.subr.mxu0 %v387
        %593 = vmatpush1.msra.mxu0 %v386
        %594 = vmatprep.subr.mxu0 %v389
        %595 = vmatpush1.msra.mxu0 %v388
        %596 = vmatprep.subr.mxu0 %v391
        %597 = vmatpush1.msra.mxu0 %v390
        %598 = vmatprep.subr.mxu0 %v393
        %599 = vmatpush1.msra.mxu0 %v392
        %600 = vmatprep.subr.mxu0 %v395
        %601 = vmatpush1.msra.mxu0 %v394
        %602 = vmatprep.subr.mxu0 %v397
        %603 = vmatpush1.msra.mxu0 %v396
        %604 = vmatprep.subr.mxu0 %v399
        %605 = vmatpush1.msra.mxu0 %v398
        %606 = vmatprep.subr.mxu0 %v401
        %607 = vmatpush1.msra.mxu0 %v400
        %608 = vmatprep.subr.mxu0 %v403
        %609 = vmatpush1.msra.mxu0 %v402
        %610 = vmatprep.subr.mxu0 %v405
        %611 = vmatpush1.msra.mxu0 %v404
        %612 = vmatprep.subr.mxu0 %v407
        %613 = vmatpush1.msra.mxu0 %v406
        %614 = vmatprep.subr.mxu0 %v409
        %615 = vmatpush1.msra.mxu0 %v408
        %616 = vmatprep.subr.mxu0 %v411
        %617 = vmatpush1.msra.mxu0 %v410
        %618 = vmatprep.mubr.f32.mxu0 %v219
        %619 = vmatmul.mubr.f32.gmra.mrb[0].mxu0 %v218
        %v620 = vpop.f32.mrb[0].mxu0
        %v621 = vadd.f32 %v550, %v620
        %v622 = vpop.f32.mrb[0].mxu0
        %v623 = vadd.f32 %v552, %v622
        %624 = vdwg.mxu0
        %s625 = sld [smem:[#allocation2]]
        %v626 = vstv %s625
        %v627 = vadd.f32 %v621, %v626
        %s628 = sld [smem:[#allocation2 + $0x1]]
        %v629 = vstv %s628
        %v630 = vadd.f32 %v623, %v629
        %v631 = vrcp.pop %v630
        %v632 = vmul.f32 %v627, %v631
        %633 = vst [vmem:[%s213] sm:$0xff] %v632
        %s634 = sand.u32 %s98, 1
        %s635 = scalar_lea.sflag [#allocation4], %s634
        %s636 = sand.u32 %s98, 1
        %s637 = smul.addr %s636, 8
        %s638 = scalar_lea.vmem [#allocation9], %s637
        // Predicated region
        $region45: #{tpu_custom_call.1} parent=31 // pred_check
          %p639 = pneg %p108
        $region46: #{tpu_custom_call.1} parent=31 // pred_check_branch
          %641 = sbr.rel (%p639) target = $region48
        $region47: #{tpu_custom_call.1} parent=31 // pred_region
          %s643 = ssub.s32 128, 128
          %644 = vsyncadd %s635, %s643
          %s645 = smul.addr %s22, 128
          %s646 = scalar_lea.hbm %s3, %s645
          %s648 = sshll.u32 %s638, 4
          %s649 = int_to_ptr.vmem [resolvable:$true] %s648
          %651 = dma.vmem_to_hbm [thread:$0]  %s649, 128, %s646, %s635
        $region48: #{tpu_custom_call.1} parent=31 // pred_fallthru
          _
      $region32: #{tpu_custom_call.1} parent=5 // pred_fallthru
        _
      %p652 = scmp.le.s32.totalorder 2, %s17
      // Predicated region
      $region49: #{tpu_custom_call.1} parent=5 // pred_check
        %p653 = pneg %p652
      $region50: #{tpu_custom_call.1} parent=5 // pred_check_branch
        %655 = sbr.rel (%p653) target = $region52
      $region51: #{tpu_custom_call.1} parent=5 // pred_region
        %s656 = ssub.s32 %s17, 2
        // Predicated region
        $region53: #{tpu_custom_call.1} parent=51 // pred_check
          %p657 = pneg %p114
        $region54: #{tpu_custom_call.1} parent=51 // pred_check_branch
          %659 = sbr.rel (%p657) target = $region56
        $region55: #{tpu_custom_call.1} parent=51 // pred_region
          %s660 = sand.u32 %s99, 1
          %s661 = scalar_lea.sflag [#allocation4], %s660
          %s662 = sand.u32 %s99, 1
          %s663 = smul.addr %s662, 8
          %s664 = scalar_lea.vmem [#allocation9], %s663
          %665 = dma.done %s661, 128
        $region56: #{tpu_custom_call.1} parent=51 // pred_fallthru
          _
      $region52: #{tpu_custom_call.1} parent=5 // pred_fallthru
        _
    $region6: #{tpu_custom_call.1} parent=1 // loop_footer
      %s21 = sadd.s32 1, %s17
    $region7: #{tpu_custom_call.1} parent=1 // loop_footer_branch
      %16 = sbr.rel target = $region3
    $region8: #{tpu_custom_call.1} parent=1 // loop_exit
      _
    %666 = vsyncpa [#allocation3], 1
    %s667 = scalar_lea.sflag [#allocation3], 1
    %668 = vsyncpa %s667, 1
    %669 = vsyncpa [#allocation8], 1
    %670 = vsyncpa [#allocation4], 1
    %s671 = scalar_lea.sflag [#allocation4], 1
    %672 = vsyncpa %s671, 1
    %673 = vsyncpa [#allocation5], 1
    %s674 = scalar_lea.sflag [#allocation5], 1
    %675 = vsyncpa %s674, 1

</llo_original>
